<compile_context>
chip_gen: v5e
topology: v5e:2x2
jax: 0.10.0
libtpu: 0.0.40
codegen_flags: <defaults>
</compile_context>

<pallas_src>
import functools
import math

import jax
import jax.numpy as jnp
import numpy as np
from jax.experimental import pallas as pl
from jax.experimental.pallas import tpu as pltpu


def _avgpool_kernel(x_ref, pw_ref, o_ref, *scratch, kernel_size, stride, padding,
                    oh, count_include_pad):
    """One grid step: pool one BC tile.

    x_ref : (TBC, H, W)        input tile (native dtype)
    pw_ref: (W, OW)            constant 0/1 column-selection matrix (f32)
    o_ref : (TBC*OH, OW)       output slab (single bulk store)
    scratch[0] (optional): (TBC, H+2*padding, W) VMEM pad buffer (padding > 0)
    """
    tbc, h, w = x_ref.shape
    f32 = jnp.float32

    # Fold the H padding into a small per-tile VMEM scratch (W padding is folded
    # into the constant P_w matrix).  Only 2*padding halo rows of extra VMEM.
    if padding > 0:
        xp_ref = scratch[0]
        zeros_halo = jnp.zeros((tbc, padding, w), x_ref.dtype)
        xp_ref[:, 0:padding, :] = zeros_halo
        xp_ref[:, padding + h:padding + h + padding, :] = zeros_halo
        xp_ref[:, padding:padding + h, :] = x_ref[...]
        src = xp_ref
    else:
        src = x_ref

    # --- H contraction: kernel_size strided-row adds on the VPU (separable). ---
    acc = jnp.zeros((tbc, oh, w), f32)
    cnt = None if count_include_pad else jnp.zeros((tbc, oh, w), f32)
    for d in range(kernel_size):
        if stride == 1:
            rows = src[:, pl.ds(d, oh), :].astype(f32)
        else:
            rows = src[:, pl.ds(d, oh, stride=stride), :].astype(f32)
        acc = acc + rows
        if not count_include_pad:
            # Module semantics: count NON-ZERO elements (pads are zero -> excluded).
            cnt = cnt + (rows != 0.0).astype(f32)

    # --- W contraction: one flat (TBC*OH, W) @ (W, OW) matmul on the MXU. ---
    m = tbc * oh
    acc2 = acc.reshape(m, w)
    pwf = pw_ref[...]
    if count_include_pad:
        s2 = jnp.dot(acc2, pwf, preferred_element_type=f32)
        out2 = s2 * (1.0 / float(kernel_size * kernel_size))
    else:
        # Fused value + count pass: one matmul, shared P_w weights.
        both = jnp.concatenate([acc2, cnt.reshape(m, w)], axis=0)
        r = jnp.dot(both, pwf, preferred_element_type=f32)
        s2 = r[:m, :]
        c2 = jnp.maximum(r[m:, :], 1.0)      # clamp(min=1) like the module
        out2 = s2 / c2                       # exact divide (small-int divisors)

    o_ref[...] = out2.astype(o_ref.dtype)    # single bulk (TBC*OH, OW) store


def _vmem_budget():
    """Per-generation VMEM tile budget + scoped limit (64 MiB v7x, 128 MiB v5e/v6e)."""
    try:
        cap = int(pltpu.get_tpu_info().vmem_capacity_bytes)
    except Exception:
        cap = 64 * 1024 * 1024               # conservative (v7x per-core)
    vmem_limit = min(cap * 3 // 4, 100 * 1024 * 1024)
    tile_budget = min(vmem_limit // 3, 24 * 1024 * 1024)
    return tile_budget, vmem_limit


def _pick_tile_bc(bc, h, w, oh, ow, *, in_itemsize, out_itemsize, padding,
                  count_include_pad, budget_bytes):
    """Choose the BC tile; pad BC up to a multiple of it (never shrink to 1)."""
    n_acc = 1 if count_include_pad else 2
    per_bc = (2 * h * w * in_itemsize                              # dbl-buffered input
              + ((h + 2 * padding) * w * in_itemsize if padding > 0 else 0)
              + 2 * oh * ow * out_itemsize                         # dbl-buffered output
              + n_acc * oh * w * 4                                 # H-sum accumulator(s)
              + oh * w * 4                                         # transient read slice
              + n_acc * oh * ow * 4)                               # matmul result(s)
    tbc = max(1, int(budget_bytes) // max(per_bc, 1))
    tbc = min(tbc, bc)
    if bc >= 2:
        tbc = min(tbc, max(1, bc // 2))      # >= 2 grid steps -> v7x megacore sharding
    # Output block (tbc*OH, OW): second-to-last dim must be a multiple of 8
    # unless the block spans the full array (grid == 1).
    align = 8 // math.gcd(oh, 8)
    if tbc >= align:
        tbc = (tbc // align) * align
    else:
        tbc = align if align <= bc else bc
    bc_pad = ((bc + tbc - 1) // tbc) * tbc   # pad BC up instead of shrinking tbc
    return tbc, bc_pad


def custom_avg_pool2d(x, kernel_size, stride=None, padding=0,
                      count_include_pad=True, out_dtype=None):
    """Pallas equivalent of CustomAvgPool2d.forward.  x: (N, C, H, W)."""
    kernel_size = int(kernel_size)
    stride = int(stride) if stride is not None else kernel_size
    padding = int(padding)
    B, C, H, W = x.shape
    Hp, Wp = H + 2 * padding, W + 2 * padding
    OH = (Hp - kernel_size) // stride + 1
    OW = (Wp - kernel_size) // stride + 1
    if OH < 1 or OW < 1:
        raise ValueError("pooling window larger than (padded) input")
    BC = B * C
    # The PyTorch module writes into torch.zeros(...) -> float32 output by default.
    out_dtype = np.dtype(jnp.float32) if out_dtype is None else np.dtype(out_dtype)

    # Constant 0/1 column-selection matrix with the zero padding folded in:
    # P_w[w, j] = 1  iff  unpadded column w falls inside output-column j's window.
    w_idx = np.arange(W)[:, None] + padding
    j_idx = np.arange(OW)[None, :] * stride
    pw = ((w_idx >= j_idx) & (w_idx < j_idx + kernel_size)).astype(np.float32)

    tile_budget, vmem_limit = _vmem_budget()
    tbc, bc_pad = _pick_tile_bc(BC, H, W, OH, OW,
                                in_itemsize=x.dtype.itemsize,
                                out_itemsize=out_dtype.itemsize,
                                padding=padding,
                                count_include_pad=count_include_pad,
                                budget_bytes=tile_budget)
    grid = (bc_pad // tbc,)

    x3 = x.reshape(BC, H, W)                 # free reshape
    if bc_pad != BC:
        x3 = jnp.pad(x3, ((0, bc_pad - BC), (0, 0), (0, 0)))

    scratch_shapes = []
    if padding > 0:
        scratch_shapes.append(pltpu.VMEM((tbc, Hp, W), x.dtype))

    n_pass = 1 if count_include_pad else 2
    flops = (bc_pad * OH * W * kernel_size * n_pass        # VPU adds (H taps)
             + 2 * bc_pad * OH * OW * W * n_pass           # MXU MACs (W contraction)
             + bc_pad * OH * OW * (1 if count_include_pad else 2))
    bytes_accessed = (bc_pad * H * W * x.dtype.itemsize
                      + bc_pad * OH * OW * out_dtype.itemsize
                      + pw.size * 4)

    kernel = functools.partial(
        _avgpool_kernel, kernel_size=kernel_size, stride=stride, padding=padding,
        oh=OH, count_include_pad=count_include_pad)

    out = pl.pallas_call(
        kernel,
        out_shape=jax.ShapeDtypeStruct((bc_pad * OH, OW), out_dtype),
        grid_spec=pltpu.PrefetchScalarGridSpec(
            num_scalar_prefetch=0,
            grid=grid,
            in_specs=[
                pl.BlockSpec((tbc, H, W), lambda t: (t, 0, 0)),
                pl.BlockSpec((W, OW), lambda t: (0, 0)),   # tiny resident constant
            ],
            out_specs=pl.BlockSpec((tbc * OH, OW), lambda t: (t, 0)),
            scratch_shapes=tuple(scratch_shapes)),
        compiler_params=pltpu.CompilerParams(
            dimension_semantics=("parallel",),             # megacore-shard BC tiles
            vmem_limit_bytes=int(vmem_limit)),
        cost_estimate=pl.CostEstimate(flops=int(flops), transcendentals=0,
                                      bytes_accessed=int(bytes_accessed)),
    )(x3, jnp.asarray(pw))

    out = out.reshape(bc_pad, OH, OW)[:BC].reshape(B, C, OH, OW)
    return out


def _reference_avgpool(x, kernel_size, stride, padding, count_include_pad):
    """NumPy port of the PyTorch module (for verification)."""
    xn = np.asarray(x, dtype=np.float64)
    B, C, H, W = xn.shape
    Hp, Wp = H + 2 * padding, W + 2 * padding
    OH = (Hp - kernel_size) // stride + 1
    OW = (Wp - kernel_size) // stride + 1
    xp = np.pad(xn, ((0, 0), (0, 0), (padding, padding), (padding, padding)))
    out = np.zeros((B, C, OH, OW), dtype=np.float64)
    for i in range(OH):
        for j in range(OW):
            hs, ws = i * stride, j * stride
            win = xp[:, :, hs:hs + kernel_size, ws:ws + kernel_size]
            if count_include_pad:
                out[:, :, i, j] = win.mean(axis=(2, 3))
            else:
                c = np.maximum((win != 0).sum(axis=(2, 3)), 1)
                out[:, :, i, j] = win.sum(axis=(2, 3)) / c
    return out


if __name__ == "__main__":
    key = jax.random.PRNGKey(0)
    x = jax.random.normal(key, (2, 4, 16, 16), dtype=jnp.float32)  # NCHW

    # Config 1: kernel=3, stride=2, padding=1, count_include_pad=True.
    y1 = jax.block_until_ready(
        custom_avg_pool2d(x, 3, stride=2, padding=1, count_include_pad=True))
    np.testing.assert_allclose(np.asarray(y1), _reference_avgpool(x, 3, 2, 1, True),
                               rtol=1e-5, atol=1e-5)

    # Config 2: count_include_pad=False (non-zero-count semantics of the module).
    y2 = jax.block_until_ready(
        custom_avg_pool2d(x, 3, stride=2, padding=1, count_include_pad=False))
    np.testing.assert_allclose(np.asarray(y2), _reference_avgpool(x, 3, 2, 1, False),
                               rtol=1e-5, atol=1e-5)

    # Config 3: default stride (= kernel_size), no padding.
    y3 = jax.block_until_ready(custom_avg_pool2d(x, 2))
    np.testing.assert_allclose(np.asarray(y3), _reference_avgpool(x, 2, 2, 0, True),
                               rtol=1e-5, atol=1e-5)

    print("KERNEL_OK")
</pallas_src>

<mosaic_0001>
module attributes {stable_mosaic.version = 11 : i64} {
  func.func @_avgpool_kernel(%arg0: i32, %arg1: memref<4x16x16xf32, #tpu.memory_space<vmem>>, %arg2: memref<16x8xf32, #tpu.memory_space<vmem>>, %arg3: memref<32x8xf32, #tpu.memory_space<vmem>>, %arg4: memref<4x18x16xf32, #tpu.memory_space<vmem>>) attributes {dimension_semantics = [#tpu.dimension_semantics<parallel>], iteration_bounds = array<i64: 2>, scalar_prefetch = 0 : i64, scratch_operands = 1 : i64, tpu.core_type = #tpu.core_type<tc>, window_params = [{transform_indices = @transform_0, window_bounds = array<i64: 4, 16, 16>}, {pipeline_mode = #tpu.pipeline_mode<synchronous>, transform_indices = @transform_1, window_bounds = array<i64: 16, 8>}, {transform_indices = @transform_2, window_bounds = array<i64: 32, 8>}]} {
    %cst = arith.constant 0.000000e+00 : f32
    %0 = vector.broadcast %cst : f32 to vector<4x1x16xf32>
    %c0 = arith.constant 0 : index
    %c0_0 = arith.constant 0 : index
    %c0_1 = arith.constant 0 : index
    %1 = vector.load %arg4[%c0, %c0_0, %c0_1] : memref<4x18x16xf32, #tpu.memory_space<vmem>>, vector<4x1x16xf32>
    tpu.vector_store %arg4[%c0, %c0_0, %c0_1], %0 {strides = array<i32>} : memref<4x18x16xf32, #tpu.memory_space<vmem>>, vector<4x1x16xf32>,
    %c0_2 = arith.constant 0 : index
    %c17 = arith.constant 17 : index
    %c0_3 = arith.constant 0 : index
    %2 = vector.load %arg4[%c0_2, %c17, %c0_3] : memref<4x18x16xf32, #tpu.memory_space<vmem>>, vector<4x1x16xf32>
    tpu.vector_store %arg4[%c0_2, %c17, %c0_3], %0 {strides = array<i32>} : memref<4x18x16xf32, #tpu.memory_space<vmem>>, vector<4x1x16xf32>,
    %c0_4 = arith.constant 0 : index
    %c0_5 = arith.constant 0 : index
    %c0_6 = arith.constant 0 : index
    %3 = vector.load %arg1[%c0_4, %c0_5, %c0_6] : memref<4x16x16xf32, #tpu.memory_space<vmem>>, vector<4x16x16xf32>
    %c0_7 = arith.constant 0 : index
    %c1 = arith.constant 1 : index
    %c0_8 = arith.constant 0 : index
    %4 = vector.load %arg4[%c0_7, %c1, %c0_8] : memref<4x18x16xf32, #tpu.memory_space<vmem>>, vector<4x16x16xf32>
    tpu.vector_store %arg4[%c0_7, %c1, %c0_8], %3 {strides = array<i32>} : memref<4x18x16xf32, #tpu.memory_space<vmem>>, vector<4x16x16xf32>,
    %cst_9 = arith.constant 0.000000e+00 : f32
    %5 = vector.broadcast %cst_9 : f32 to vector<4x8x16xf32>
    %c0_10 = arith.constant 0 : index
    %c0_11 = arith.constant 0 : index
    %c0_12 = arith.constant 0 : index
    %6 = tpu.strided_load %arg4[%c0_10, %c0_11, %c0_12] {strides = array<i32: 1, 2, 1>} : memref<4x18x16xf32, #tpu.memory_space<vmem>>, vector<4x8x16xf32>
    %7 = arith.addf %5, %6 : vector<4x8x16xf32>
    %c0_13 = arith.constant 0 : index
    %c1_14 = arith.constant 1 : index
    %c0_15 = arith.constant 0 : index
    %8 = tpu.strided_load %arg4[%c0_13, %c1_14, %c0_15] {strides = array<i32: 1, 2, 1>} : memref<4x18x16xf32, #tpu.memory_space<vmem>>, vector<4x8x16xf32>
    %9 = arith.addf %7, %8 : vector<4x8x16xf32>
    %c0_16 = arith.constant 0 : index
    %c2 = arith.constant 2 : index
    %c0_17 = arith.constant 0 : index
    %10 = tpu.strided_load %arg4[%c0_16, %c2, %c0_17] {strides = array<i32: 1, 2, 1>} : memref<4x18x16xf32, #tpu.memory_space<vmem>>, vector<4x8x16xf32>
    %11 = arith.addf %9, %10 : vector<4x8x16xf32>
    %12 = vector.shape_cast %11 : vector<4x8x16xf32> to vector<32x16xf32>
    %c0_18 = arith.constant 0 : index
    %c0_19 = arith.constant 0 : index
    %13 = vector.load %arg2[%c0_18, %c0_19] : memref<16x8xf32, #tpu.memory_space<vmem>>, vector<16x8xf32>
    %cst_20 = arith.constant dense<0.000000e+00> : vector<32x8xf32>
    %14 = tpu.matmul %12, %13, %cst_20 {dimension_numbers = #tpu.dot_dimension_numbers<[1], [0], [0], [1], [0, 0, 1, 1], [], []>} : vector<32x16xf32>, vector<16x8xf32>, vector<32x8xf32> -> vector<32x8xf32>
    %cst_21 = arith.constant 0.111111112 : f32
    %15 = vector.broadcast %cst_21 : f32 to vector<32x8xf32>
    %16 = arith.mulf %14, %15 : vector<32x8xf32>
    %c0_22 = arith.constant 0 : index
    %c0_23 = arith.constant 0 : index
    %17 = vector.load %arg3[%c0_22, %c0_23] : memref<32x8xf32, #tpu.memory_space<vmem>>, vector<32x8xf32>
    tpu.vector_store %arg3[%c0_22, %c0_23], %16 {strides = array<i32>} : memref<32x8xf32, #tpu.memory_space<vmem>>, vector<32x8xf32>,
    return
  }
  func.func @transform_0(%arg0: i32) -> (i32, i32, i32) {
    %c0_i32 = arith.constant 0 : i32
    %c0_i32_0 = arith.constant 0 : i32
    %c0_i32_1 = arith.constant 0 : i32
    return %arg0, %c0_i32, %c0_i32_0 : i32, i32, i32
  }
  func.func @transform_1(%arg0: i32) -> (i32, i32) {
    %c0_i32 = arith.constant 0 : i32
    %c0_i32_0 = arith.constant 0 : i32
    %c0_i32_1 = arith.constant 0 : i32
    return %c0_i32, %c0_i32_0 : i32, i32
  }
  func.func @transform_2(%arg0: i32) -> (i32, i32) {
    %c0_i32 = arith.constant 0 : i32
    %c0_i32_0 = arith.constant 0 : i32
    return %arg0, %c0_i32 : i32, i32
  }
}

</mosaic_0001>

<llo_original>
// kernel: tpu_custom_call.1
$region0: #{tpu_custom_call.1}
  #allocation0 [shape = 'u32[]', space=smem, size = 0x4, offset = 0x4, fixed_abs, tag = 'smem constant byte address 0x4 - core index']
  #allocation1 [shape = 'u32[72,128]{1,0:T(1,128)}', space=vmem, size = 0x9000, scoped, tag = 'internal scratch']
  #allocation2 [shape = 'f32[4,18,16]{2,1,0:T(8,128)}', space=vmem, size = 0xc000, scoped, tag = 'scratch operand']
  %s0 = inlined_call_operand.hbm [shape: f32[8,16,16], index: 0, kind: input, shape index: {}]
  %s1 = inlined_call_operand.vmem [shape: f32[16,8], index: 1, kind: input, shape index: {}]
  %s2 = inlined_call_operand.vmem [shape: f32[64,8], index: 2, kind: output, shape index: {}]
  %s3 = sld [smem:[#allocation0]]
  $region45: #{tpu_custom_call.1} parent=0
    _
  %s5 = ssub.s32 1, %s3
  %s6 = scalar_select 0, %s5, %s3
  $region1: #{tpu_custom_call.1} parent=0
    #allocation3 [shape = 'u8[65536]{0}', space=vmem, size = 0x10000, scoped, tag = 'input window, operand 0']
    #allocation4 [shape = 's32[2]{0}', space=sflag, size = 0x8, scoped, tag = 'scoped memory for tpu_custom_call.1']
    %7 = vsyncpa [#allocation4], 0
    %s8 = scalar_lea.sflag [#allocation4], 1
    %9 = vsyncpa %s8, 0
    loop: start=0, step=1, limit=4
    $region2: #{tpu_custom_call.1} parent=1 // loop_pre_header
      _
    $region3: #{tpu_custom_call.1} parent=1 // loop_header
      %s11 = sphi 0, %s15
      %p12 = scmp.ge.s32.totalorder %s11, 4
      %s21 = sphi 0, %s23
      %s24 = sphi 0, %s21
      %s25 = sphi 0, %s24
      %s41 = sphi 0, %s25
      %s45 = sphi 0, %s45
      %s47 = sphi 0, %s45
      %s48 = sphi 0, %s47
      %s62 = sphi 0, %s48
      %s68 = sphi 0, %s70
      %s71 = sphi 0, %s68
      %s72 = sphi 0, %s71
      %s88 = sphi 0, %s72
    $region4: #{tpu_custom_call.1} parent=1 // loop_header_branch
      %14 = sbr.rel (%p12) target = $region8
    $region5: #{tpu_custom_call.1} parent=1 // loop_body
      %s16 = ssub.s32 %s11, 1
      %s17 = ssub.s32 %s11, 2
      %s18 = sadd.s32 %s11, 1
      %s19 = ssub.s32 %s11, %s18
      %p20 = scmp.eq.s32.totalorder %s19, 0
      %s22 = sadd.s32 %s21, 1
      %s23 = scalar_select %p20, %s21, %s22
      %p26 = pneg %p20
      %p27 = scmp.eq.s32.totalorder %s11, 1
      %p28 = por %p26, %p27
      %p29 = scmp.ne.s32.totalorder %s21, %s24
      %p30 = scmp.eq.s32.totalorder %s11, 0
      %p31 = por %p29, %p30
      %p32 = scmp.ne.s32.totalorder %s21, %s24
      %p33 = scmp.eq.s32.totalorder %s16, 1
      %p34 = por %p32, %p33
      %p35 = scmp.ne.s32.totalorder %s24, %s25
      %p36 = scmp.eq.s32.totalorder %s16, 0
      %p37 = por %p35, %p36
      %p38 = scmp.ne.s32.totalorder %s24, %s25
      %p39 = scmp.eq.s32.totalorder %s17, 1
      %p40 = por %p38, %p39
      %p42 = scmp.ne.s32.totalorder %s25, %s41
      %p43 = scmp.eq.s32.totalorder %s17, 0
      %p44 = por %p42, %p43
      %s46 = sadd.s32 %s45, 1
      %p49 = scmp.eq.s32.totalorder %s11, 1
      %p50 = scmp.ne.s32.totalorder %s45, %s47
      %p51 = scmp.eq.s32.totalorder %s11, 0
      %p52 = por %p50, %p51
      %p53 = scmp.ne.s32.totalorder %s45, %s47
      %p54 = scmp.eq.s32.totalorder %s16, 1
      %p55 = por %p53, %p54
      %p56 = scmp.ne.s32.totalorder %s47, %s48
      %p57 = scmp.eq.s32.totalorder %s16, 0
      %p58 = por %p56, %p57
      %p59 = scmp.ne.s32.totalorder %s47, %s48
      %p60 = scmp.eq.s32.totalorder %s17, 1
      %p61 = por %p59, %p60
      %p63 = scmp.ne.s32.totalorder %s48, %s62
      %p64 = scmp.eq.s32.totalorder %s17, 0
      %p65 = por %p63, %p64
      %s66 = ssub.s32 %s11, %s18
      %p67 = scmp.eq.s32.totalorder %s66, 0
      %s69 = sadd.s32 %s68, 1
      %s70 = scalar_select %p67, %s68, %s69
      %p73 = pneg %p67
      %p74 = scmp.eq.s32.totalorder %s11, 1
      %p75 = por %p73, %p74
      %p76 = scmp.ne.s32.totalorder %s68, %s71
      %p77 = scmp.eq.s32.totalorder %s11, 0
      %p78 = por %p76, %p77
      %p79 = scmp.ne.s32.totalorder %s68, %s71
      %p80 = scmp.eq.s32.totalorder %s16, 1
      %p81 = por %p79, %p80
      %p82 = scmp.ne.s32.totalorder %s71, %s72
      %p83 = scmp.eq.s32.totalorder %s16, 0
      %p84 = por %p82, %p83
      %p85 = scmp.ne.s32.totalorder %s71, %s72
      %p86 = scmp.eq.s32.totalorder %s17, 1
      %p87 = por %p85, %p86
      %p89 = scmp.ne.s32.totalorder %s72, %s88
      %p90 = scmp.eq.s32.totalorder %s17, 0
      %p91 = por %p89, %p90
      %p92 = scmp.le.s32.totalorder 1, %s11
      %p93 = scmp.lt.s32.totalorder %s11, 3
      %p94 = pnand %p92, %p93
      %p95 = pneg %p94
      // Predicated region
      $region9: #{tpu_custom_call.1} parent=5 // pred_check
        _
      $region10: #{tpu_custom_call.1} parent=5 // pred_check_branch
        %97 = sbr.rel (%p94) target = $region12
      $region11: #{tpu_custom_call.1} parent=5 // pred_region
        %s98 = ssub.s32 %s11, 1
        // Predicated region
        $region13: #{tpu_custom_call.1} parent=11 // pred_check
          %p99 = pneg %p58
        $region14: #{tpu_custom_call.1} parent=11 // pred_check_branch
          %101 = sbr.rel (%p99) target = $region16
        $region15: #{tpu_custom_call.1} parent=11 // pred_region
          _
        $region16: #{tpu_custom_call.1} parent=11 // pred_fallthru
          _
      $region12: #{tpu_custom_call.1} parent=5 // pred_fallthru
        _
      %p102 = scmp.lt.s32.totalorder %s11, 2
      // Predicated region
      $region17: #{tpu_custom_call.1} parent=5 // pred_check
        %p103 = pneg %p102
      $region18: #{tpu_custom_call.1} parent=5 // pred_check_branch
        %105 = sbr.rel (%p103) target = $region20
      $region19: #{tpu_custom_call.1} parent=5 // pred_region
        // Predicated region
        $region21: #{tpu_custom_call.1} parent=19 // pred_check
          %p106 = pneg %p31
        $region22: #{tpu_custom_call.1} parent=19 // pred_check_branch
          %108 = sbr.rel (%p106) target = $region24
        $region23: #{tpu_custom_call.1} parent=19 // pred_region
          %s109 = sand.u32 %s21, 1
          %s110 = scalar_lea.sflag [#allocation4], %s109
          %s111 = sand.u32 %s21, 1
          %s112 = smul.addr %s111, 64
          %s113 = scalar_lea.vmem [#allocation3], %s112
          %s114 = smul.u32 4, %s11
          %116 = vsyncadd %s110, 0
          %s117 = smul.addr %s114, 2
          %s118 = smul.addr %s117, 8
          %s119 = scalar_lea.hbm %s0, %s118
          %s120 = sshll.u32 %s119, 4
          %s121 = int_to_ptr.hbm [resolvable:$true] %s120
          %s122 = sshll.u32 %s113, 4
          %s123 = int_to_ptr.vmem [resolvable:$true] %s122
          %128 = dma.hbm_to_vmem [thread:$0]  %s121, 1024, %s123, %s110, 128, 128, 8
        $region24: #{tpu_custom_call.1} parent=19 // pred_fallthru
          _
      $region20: #{tpu_custom_call.1} parent=5 // pred_fallthru
        _
      %p129 = scmp.le.s32.totalorder 1, %s11
      %p130 = scmp.lt.s32.totalorder %s11, 3
      %p131 = pnand %p129, %p130
      %p132 = pneg %p131
      // Predicated region
      $region25: #{tpu_custom_call.1} parent=5 // pred_check
        _
      $region26: #{tpu_custom_call.1} parent=5 // pred_check_branch
        %134 = sbr.rel (%p131) target = $region28
      $region27: #{tpu_custom_call.1} parent=5 // pred_region
        %s135 = ssub.s32 %s11, 1
        %s136 = sand.u32 %s24, 1
        %s137 = scalar_lea.sflag [#allocation4], %s136
        %s138 = sand.u32 %s24, 1
        %s139 = smul.addr %s138, 64
        %s140 = scalar_lea.vmem [#allocation3], %s139
        // Predicated region
        $region29: #{tpu_custom_call.1} parent=27 // pred_check
          %p141 = pneg %p37
        $region30: #{tpu_custom_call.1} parent=27 // pred_check_branch
          %143 = sbr.rel (%p141) target = $region32
        $region31: #{tpu_custom_call.1} parent=27 // pred_region
          %145 = dma.done %s137, 1024
        $region32: #{tpu_custom_call.1} parent=27 // pred_fallthru
          _
        %s146 = sand.u32 %s24, 1
        %s147 = scalar_lea.sflag [#allocation4], %s146
        %s148 = sand.u32 %s24, 1
        %s149 = smul.addr %s148, 64
        %s150 = scalar_lea.vmem [#allocation3], %s149
        %p151 = pneg %p37
        %p152 = pneg %p34
        %p153 = pneg %p58
        %p154 = pneg %p55
        %p155 = pneg %p84
        %p156 = pneg %p81
        %s157 = smul.u32 4, %s16
        %p158 = scmp.lt.s32.totalorder %s157, 7
        %s159 = scalar_select %p158, %s157, 7
        %s160 = smul.addr %s159, 8
        %s161 = scalar_lea.vmem %s2, %s160
        %s162 = smul.u32 4, %s16
        %s163 = smul.u32 4, %s16
        %p164 = scmp.lt.s32.totalorder %s163, 7
        %s165 = scalar_select %p164, %s163, 7
        %s166 = smul.addr %s165, 8
        %s167 = scalar_lea.vmem %s2, %s166
        %s168 = smul.u32 4, %s16
        %vm169 = vcmask 122880
        %170 = vst.msk [vmem:[#allocation2] sm:$0x1] %vm169, 0.0
        %171 = vst.msk [vmem:[#allocation2 + $0x18] sm:$0x1] %vm169, 0.0
        %172 = vst.msk [vmem:[#allocation2 + $0x30] sm:$0x1] %vm169, 0.0
        %173 = vst.msk [vmem:[#allocation2 + $0x48] sm:$0x1] %vm169, 0.0
        %174 = vst.msk [vmem:[#allocation2 + $0x11] sm:$0x1] %vm169, 0.0
        %175 = vst.msk [vmem:[#allocation2 + $0x29] sm:$0x1] %vm169, 0.0
        %176 = vst.msk [vmem:[#allocation2 + $0x41] sm:$0x1] %vm169, 0.0
        %177 = vst.msk [vmem:[#allocation2 + $0x59] sm:$0x1] %vm169, 0.0
        %v178 = vld [vmem:[%s140] sm:$0xff]
        %v179 = vld [vmem:[%s140 + $0x8] sm:$0xff]
        %v180 = vld [vmem:[%s140 + $0x10] sm:$0xff]
        %v181 = vld [vmem:[%s140 + $0x18] sm:$0xff]
        %v182 = vld [vmem:[%s140 + $0x20] sm:$0xff]
        %v183 = vld [vmem:[%s140 + $0x28] sm:$0xff]
        %v184 = vld [vmem:[%s140 + $0x30] sm:$0xff]
        %v185 = vld [vmem:[%s140 + $0x38] sm:$0xff]
        %vm186 = vcmask 130048
        %187 = vst.msk [vmem:[#allocation2 + $0x1] sm:$0xff] %vm186, %v178
        %188 = vst.msk [vmem:[#allocation2 + $0x9] sm:$0xff] %vm186, %v179
        %189 = vst.msk [vmem:[#allocation2 + $0x19] sm:$0xff] %vm186, %v180
        %190 = vst.msk [vmem:[#allocation2 + $0x21] sm:$0xff] %vm186, %v181
        %191 = vst.msk [vmem:[#allocation2 + $0x31] sm:$0xff] %vm186, %v182
        %192 = vst.msk [vmem:[#allocation2 + $0x39] sm:$0xff] %vm186, %v183
        %193 = vst.msk [vmem:[#allocation2 + $0x49] sm:$0xff] %vm186, %v184
        %194 = vst.msk [vmem:[#allocation2 + $0x51] sm:$0xff] %vm186, %v185
        %v195 = vld [vmem:[#allocation2] ss:$2 sm:$0xff]
        %s196 = scalar_lea.vmem [#allocation2], 24
        %v197 = vld [vmem:[%s196] ss:$2 sm:$0xff]
        %s198 = scalar_lea.vmem [#allocation2], 48
        %v199 = vld [vmem:[%s198] ss:$2 sm:$0xff]
        %s200 = scalar_lea.vmem [#allocation2], 72
        %v201 = vld [vmem:[%s200] ss:$2 sm:$0xff]
        %v202 = vadd.f32 %v195, 0.0
        %v203 = vadd.f32 %v197, 0.0
        %v204 = vadd.f32 %v199, 0.0
        %v205 = vadd.f32 %v201, 0.0
        %s206 = scalar_lea.vmem [#allocation2], 1
        %v207 = vld [vmem:[%s206] ss:$2 sm:$0xff]
        %s208 = scalar_lea.vmem [#allocation2], 25
        %v209 = vld [vmem:[%s208] ss:$2 sm:$0xff]
        %s210 = scalar_lea.vmem [#allocation2], 49
        %v211 = vld [vmem:[%s210] ss:$2 sm:$0xff]
        %s212 = scalar_lea.vmem [#allocation2], 73
        %v213 = vld [vmem:[%s212] ss:$2 sm:$0xff]
        %v214 = vadd.f32 %v202, %v207
        %v215 = vadd.f32 %v203, %v209
        %v216 = vadd.f32 %v204, %v211
        %v217 = vadd.f32 %v205, %v213
        %s218 = scalar_lea.vmem [#allocation2], 2
        %v219 = vld [vmem:[%s218] ss:$2 sm:$0xff]
        %s220 = scalar_lea.vmem [#allocation2], 26
        %v221 = vld [vmem:[%s220] ss:$2 sm:$0xff]
        %s222 = scalar_lea.vmem [#allocation2], 50
        %v223 = vld [vmem:[%s222] ss:$2 sm:$0xff]
        %s224 = scalar_lea.vmem [#allocation2], 74
        %v225 = vld [vmem:[%s224] ss:$2 sm:$0xff]
        %v226 = vadd.f32 %v214, %v219
        %v227 = vadd.f32 %v215, %v221
        %v228 = vadd.f32 %v216, %v223
        %v229 = vadd.f32 %v217, %v225
        %v230 = vld [vmem:[%s1] sm:$0xff]
        %v231 = vld [vmem:[%s1 + $0x8] sm:$0xff]
        %v233 = vsel %vm186, %v226, 0
        %v236 = vsel %vm186, %v227, 0
        %v239 = vsel %vm186, %v228, 0
        %v242 = vsel %vm186, %v229, 0
        %244 = vmatpush.msra.mxu0 0.0
        %245 = vmatpush.msra.mxu0 0.0
        %246 = vmatpush.msra.mxu0 0.0
        %247 = vmatpush.msra.mxu0 0.0
        %248 = vmatpush.msra.mxu0 0.0
        %249 = vmatpush.msra.mxu0 0.0
        %250 = vmatpush.msra.mxu0 0.0
        %251 = vmatpush.msra.mxu0 0.0
        %252 = vmatpush.msra.mxu0 0.0
        %253 = vmatpush.msra.mxu0 0.0
        %254 = vmatpush.msra.mxu0 0.0
        %255 = vmatpush.msra.mxu0 0.0
        %256 = vmatpush.msra.mxu0 0.0
        %257 = vmatpush.msra.mxu0 0.0
        %258 = vmatpush.msra.mxu0 %v231
        %259 = vmatpush.msra.mxu0 %v230
        %260 = vmatmul.f32.gmra.mxu0 %v233
        %v261 = vpop.f32.mrf.mxu0
        %v262 = vadd.f32 0.0, %v261
        %263 = vmatmul.f32.gmra.mxu0 %v236
        %v264 = vpop.f32.mrf.mxu0
        %v265 = vadd.f32 0.0, %v264
        %266 = vmatmul.f32.gmra.mxu0 %v239
        %v267 = vpop.f32.mrf.mxu0
        %v268 = vadd.f32 0.0, %v267
        %269 = vmatmul.f32.gmra.mxu0 %v242
        %v270 = vpop.f32.mrf.mxu0
        %v271 = vadd.f32 0.0, %v270
        %272 = vdwg.mxu0
        %v273 = vmul.f32 %v262, 0.11111111
        %v274 = vmul.f32 %v265, 0.11111111
        %v275 = vmul.f32 %v268, 0.11111111
        %v276 = vmul.f32 %v271, 0.11111111
        %vm277 = vcmask 64512
        %278 = vst.msk [vmem:[%s167] sm:$0xff] %vm277, %v273
        %279 = vst.msk [vmem:[%s167 + $0x8] sm:$0xff] %vm277, %v274
        %280 = vst.msk [vmem:[%s167 + $0x10] sm:$0xff] %vm277, %v275
        %281 = vst.msk [vmem:[%s167 + $0x18] sm:$0xff] %vm277, %v276
        %s282 = smul.u32 4, %s16
        %p283 = scmp.lt.s32.totalorder %s282, 7
        %s284 = scalar_select %p283, %s282, 7
        %s285 = smul.addr %s284, 8
        %s286 = scalar_lea.vmem %s2, %s285
        // Predicated region
        $region33: #{tpu_custom_call.1} parent=27 // pred_check
          %p287 = pneg %p81
        $region34: #{tpu_custom_call.1} parent=27 // pred_check_branch
          %289 = sbr.rel (%p287) target = $region36
        $region35: #{tpu_custom_call.1} parent=27 // pred_region
          %s290 = smul.u32 4, %s16
        $region36: #{tpu_custom_call.1} parent=27 // pred_fallthru
          _
      $region28: #{tpu_custom_call.1} parent=5 // pred_fallthru
        _
      %p291 = scmp.le.s32.totalorder 2, %s11
      // Predicated region
      $region37: #{tpu_custom_call.1} parent=5 // pred_check
        %p292 = pneg %p291
      $region38: #{tpu_custom_call.1} parent=5 // pred_check_branch
        %294 = sbr.rel (%p292) target = $region40
      $region39: #{tpu_custom_call.1} parent=5 // pred_region
        %s295 = ssub.s32 %s11, 2
        // Predicated region
        $region41: #{tpu_custom_call.1} parent=39 // pred_check
          %p296 = pneg %p87
        $region42: #{tpu_custom_call.1} parent=39 // pred_check_branch
          %298 = sbr.rel (%p296) target = $region44
        $region43: #{tpu_custom_call.1} parent=39 // pred_region
          %s299 = smul.u32 4, %s17
          %p300 = scmp.lt.s32.totalorder %s299, 7
          %s301 = scalar_select %p300, %s299, 7
          %s302 = smul.addr %s301, 8
          %s303 = scalar_lea.vmem %s2, %s302
        $region44: #{tpu_custom_call.1} parent=39 // pred_fallthru
          _
      $region40: #{tpu_custom_call.1} parent=5 // pred_fallthru
        _
    $region6: #{tpu_custom_call.1} parent=1 // loop_footer
      %s15 = sadd.s32 1, %s11
    $region7: #{tpu_custom_call.1} parent=1 // loop_footer_branch
      %10 = sbr.rel target = $region3
    $region8: #{tpu_custom_call.1} parent=1 // loop_exit
      _
    %304 = vsyncpa [#allocation4], 1
    %s305 = scalar_lea.sflag [#allocation4], 1
    %306 = vsyncpa %s305, 1

</llo_original>
